<compile_context>
chip_gen: v6e
topology: v6e:2x2x1
jax: 0.10.0
libtpu: 0.0.40
codegen_flags: <defaults>
</compile_context>

<pallas_src>
from functools import partial

import jax
import jax.numpy as jnp
from jax.experimental import pallas as pl
from jax.experimental.pallas import tpu as pltpu

K = 3  # conv kernel size of the synthetic feature extractor


def _round_up(x, m):
    return ((x + m - 1) // m) * m


def _pick_tn(n, pp, kkc_pad):
    """Batch tile: ~1 MiB bf16 patch block per grid step, multiple of 8,
    divides N, and >= 2 grid steps when N >= 16 (v7x megacore)."""
    if n % 8 != 0:
        return n  # full-extent block is always legal
    target = 1 << 20
    tn_cap = max(8, (target // (pp * kkc_pad * 2)) // 8 * 8)
    if n >= 16:
        tn_cap = min(tn_cap, max(8, (n // 2) // 8 * 8))
    best = None
    for t in range(8, min(tn_cap, n) + 1, 8):
        if n % t == 0:
            best = t
    return best if best is not None else n


def _finetune_kernel(patch_ref, wc_ref, bc_ref, wf_ref, bf_ref, out_ref, *, real_rows):
    # patch_ref: (TN*Pp, KKCp)  bf16 im2col patches (k lane-padded to 128)
    # wc_ref:    (KKCp, Cpad)   bf16 conv weight (im2col layout, lane-padded)
    # bc_ref:    (1, Cpad)      f32  conv bias
    # wf_ref:    (Cpad, NCpad)  bf16 classifier weight (transposed, lane-padded)
    # bf_ref:    (1, NCpad)     f32  classifier bias
    # out_ref:   (TN, NCpad)    f32  logits (lane-dense, sliced outside)
    tn = out_ref.shape[0]
    pp = patch_ref.shape[0] // tn
    cpad = wc_ref.shape[1]

    # "features": 3x3 conv as one tall lane-dense MXU matmul (k = 128).
    conv = jnp.dot(patch_ref[...], wc_ref[...],
                   preferred_element_type=jnp.float32)            # (TN*Pp, Cpad) f32

    # F.relu(f): bias add + ReLU in f32 on the VPU.
    f = jnp.maximum(conv + bc_ref[...], 0.0)

    # F.avg_pool2d(f, 7) on a 7x7 map -> per-image mean over the 49 real rows.
    # Tile-aligned reshape (Pp is a multiple of 8) + masked sublane sum in f32.
    f3 = f.reshape(tn, pp, cpad)
    row = jax.lax.broadcasted_iota(jnp.int32, (tn, pp, cpad), 1)
    f3 = jnp.where(row < real_rows, f3, 0.0)                      # mask pad rows
    pooled = jnp.sum(f3, axis=1) * (1.0 / real_rows)              # (TN, Cpad) f32

    # classifier: nn.Linear(num_feats, num_classes), bf16 MXU / f32 acc.
    y = jnp.dot(pooled.astype(jnp.bfloat16), wf_ref[...],
                preferred_element_type=jnp.float32) + bf_ref[...]
    out_ref[...] = y


def finetune_forward(x, conv_w, conv_b, fc_w, fc_b):
    """x: (N, Cin, H, W) NCHW float32. Returns (N, num_classes) float32."""
    N, Cin, H, W = x.shape
    Cout = conv_w.shape[0]
    num_classes = fc_w.shape[0]

    P = H * W                              # 49 pixels per image
    Pp = _round_up(P, 8)                   # sublane-align each image's row slab
    KKC = Cin * K * K
    KKCp = _round_up(KKC, 128)             # lane-pad the contraction dim
    Cpad = _round_up(Cout, 128)            # lane-pad conv channels
    NCpad = _round_up(num_classes, 128)    # lane-pad classifier output

    TN = _pick_tn(N, Pp, KKCp)
    grid = (N // TN,)

    # --- glue: im2col for a 3x3 / stride 1 / pad 1 conv (fused by jit) ---
    xp = jnp.pad(x, ((0, 0), (0, 0), (1, 1), (1, 1)))
    cols = jnp.stack(
        [xp[:, :, kh:kh + H, kw:kw + W] for kh in range(K) for kw in range(K)],
        axis=2,
    )                                                        # (N, Cin, K*K, H, W)
    patches = cols.reshape(N, KKC, P).transpose(0, 2, 1)     # (N, P, KKC)
    patches = jnp.pad(patches, ((0, 0), (0, Pp - P), (0, KKCp - KKC)))
    patches2d = patches.reshape(N * Pp, KKCp).astype(jnp.bfloat16)

    # Lane-padded weights / biases (zeros in the padding -> exact results).
    wc = (jnp.zeros((KKCp, Cpad), jnp.float32)
          .at[:KKC, :Cout].set(conv_w.reshape(Cout, KKC).T)).astype(jnp.bfloat16)
    bc = jnp.zeros((1, Cpad), jnp.float32).at[:, :Cout].set(conv_b)
    wf = (jnp.zeros((Cpad, NCpad), jnp.float32)
          .at[:Cout, :num_classes].set(fc_w.T)).astype(jnp.bfloat16)
    bf = jnp.zeros((1, NCpad), jnp.float32).at[:, :num_classes].set(fc_b)

    flops = (2 * N * Pp * KKCp * Cpad          # conv matmul
             + 3 * N * Pp * Cpad               # bias + relu + pool reduce
             + 2 * N * Cpad * NCpad)           # classifier matmul
    bytes_accessed = (patches2d.size * 2 + wc.size * 2 + wf.size * 2
                      + bc.size * 4 + bf.size * 4 + N * NCpad * 4)
    cost = pl.CostEstimate(flops=flops, transcendentals=0,
                           bytes_accessed=bytes_accessed)

    out = pl.pallas_call(
        partial(_finetune_kernel, real_rows=P),
        out_shape=jax.ShapeDtypeStruct((N, NCpad), jnp.float32),
        grid=grid,
        in_specs=[
            pl.BlockSpec((TN * Pp, KKCp), lambda i: (i, 0)),  # patches: per batch tile
            pl.BlockSpec((KKCp, Cpad), lambda i: (0, 0)),     # conv weight (resident)
            pl.BlockSpec((1, Cpad), lambda i: (0, 0)),        # conv bias
            pl.BlockSpec((Cpad, NCpad), lambda i: (0, 0)),    # classifier weight
            pl.BlockSpec((1, NCpad), lambda i: (0, 0)),       # classifier bias
        ],
        out_specs=pl.BlockSpec((TN, NCpad), lambda i: (i, 0)),
        compiler_params=pltpu.CompilerParams(
            dimension_semantics=("parallel",),
            vmem_limit_bytes=48 * 1024 * 1024),
        cost_estimate=cost,
    )(patches2d, wc, bc, wf, bf)

    return out[:, :num_classes]


def _reference(x, conv_w, conv_b, fc_w, fc_b):
    """Pure-JAX f32 reference of the same forward pass."""
    f = jax.lax.conv_general_dilated(
        x, conv_w, window_strides=(1, 1), padding=((1, 1), (1, 1)),
        dimension_numbers=("NCHW", "OIHW", "NCHW"))
    f = f + conv_b[None, :, None, None]
    f = jnp.maximum(f, 0.0)
    pooled = jnp.mean(f, axis=(2, 3))
    return pooled @ fc_w.T + fc_b


if __name__ == "__main__":
    key = jax.random.PRNGKey(0)
    k1, k2, k3, k4, k5 = jax.random.split(key, 5)

    # densenet-style 7x7 feature map produced by the synthetic backbone;
    # avg_pool2d(kernel_size=7) reduces it to 1x1 as in the module.
    N, Cin, H, W = 16, 4, 7, 7
    Cout, num_classes = 32, 10

    x = jax.random.normal(k1, (N, Cin, H, W), dtype=jnp.float32)

    # synthetic backbone params (deterministic; not a checkpoint load)
    conv_w = jax.random.normal(k2, (Cout, Cin, K, K), dtype=jnp.float32) * 0.1
    conv_b = jax.random.normal(k3, (Cout,), dtype=jnp.float32) * 0.1

    # classifier Linear(Cout, num_classes) with kaiming_normal weights
    # (std = sqrt(2 / fan_in)), matching FineTuneModel.__init__
    fc_w = jax.random.normal(k4, (num_classes, Cout), dtype=jnp.float32) * jnp.sqrt(2.0 / Cout)
    fc_b = jax.random.normal(k5, (num_classes,), dtype=jnp.float32) * 0.01

    fwd = jax.jit(finetune_forward)
    y = fwd(x, conv_w, conv_b, fc_w, fc_b)
    jax.block_until_ready(y)
    assert y.shape == (N, num_classes) and y.dtype == jnp.float32

    # sanity check vs. f32 reference (bf16 MXU inputs, f32 accumulation)
    y_ref = _reference(x, conv_w, conv_b, fc_w, fc_b)
    max_err = float(jnp.max(jnp.abs(y - y_ref)))
    assert jnp.allclose(y, y_ref, rtol=5e-2, atol=5e-2), max_err

    print("KERNEL_OK")
</pallas_src>

<mosaic_0001>
module attributes {stable_mosaic.version = 11 : i64} {
  func.func @_finetune_kernel(%arg0: i32, %arg1: memref<448x128xbf16, #tpu.memory_space<vmem>>, %arg2: memref<128x128xbf16, #tpu.memory_space<vmem>>, %arg3: memref<1x128xf32, #tpu.memory_space<vmem>>, %arg4: memref<128x128xbf16, #tpu.memory_space<vmem>>, %arg5: memref<1x128xf32, #tpu.memory_space<vmem>>, %arg6: memref<8x128xf32, #tpu.memory_space<vmem>>) attributes {dimension_semantics = [#tpu.dimension_semantics<parallel>], iteration_bounds = array<i64: 2>, scalar_prefetch = 0 : i64, scratch_operands = 0 : i64, tpu.core_type = #tpu.core_type<tc>, window_params = [{transform_indices = @transform_0, window_bounds = array<i64: 448, 128>}, {pipeline_mode = #tpu.pipeline_mode<synchronous>, transform_indices = @transform_1, window_bounds = array<i64: 128, 128>}, {pipeline_mode = #tpu.pipeline_mode<synchronous>, transform_indices = @transform_2, window_bounds = array<i64: 1, 128>}, {pipeline_mode = #tpu.pipeline_mode<synchronous>, transform_indices = @transform_3, window_bounds = array<i64: 128, 128>}, {pipeline_mode = #tpu.pipeline_mode<synchronous>, transform_indices = @transform_4, window_bounds = array<i64: 1, 128>}, {transform_indices = @transform_5, window_bounds = array<i64: 8, 128>}]} {
    %c0 = arith.constant 0 : index
    %c0_0 = arith.constant 0 : index
    %0 = vector.load %arg1[%c0, %c0_0] : memref<448x128xbf16, #tpu.memory_space<vmem>>, vector<448x128xbf16>
    %c0_1 = arith.constant 0 : index
    %c0_2 = arith.constant 0 : index
    %1 = vector.load %arg2[%c0_1, %c0_2] : memref<128x128xbf16, #tpu.memory_space<vmem>>, vector<128x128xbf16>
    %cst = arith.constant dense<0.000000e+00> : vector<448x128xf32>
    %2 = tpu.matmul %0, %1, %cst {dimension_numbers = #tpu.dot_dimension_numbers<[1], [0], [0], [1], [0, 0, 1, 1], [], []>} : vector<448x128xbf16>, vector<128x128xbf16>, vector<448x128xf32> -> vector<448x128xf32>
    %c0_3 = arith.constant 0 : index
    %c0_4 = arith.constant 0 : index
    %3 = vector.load %arg3[%c0_3, %c0_4] : memref<1x128xf32, #tpu.memory_space<vmem>>, vector<1x128xf32>
    %4 = vector.broadcast %3 : vector<1x128xf32> to vector<448x128xf32>
    %5 = arith.addf %2, %4 : vector<448x128xf32>
    %cst_5 = arith.constant 0.000000e+00 : f32
    %6 = vector.broadcast %cst_5 : f32 to vector<448x128xf32>
    %7 = arith.maximumf %5, %6 : vector<448x128xf32>
    %8 = vector.shape_cast %7 : vector<448x128xf32> to vector<8x56x128xf32>
    %9 = tpu.iota {dimensions = array<i32: 1>} : vector<8x56x128xi32>
    %c49_i32 = arith.constant 49 : i32
    %10 = vector.broadcast %c49_i32 : i32 to vector<8x56x128xi32>
    %11 = arith.cmpi slt, %9, %10 : vector<8x56x128xi32>
    %cst_6 = arith.constant 0.000000e+00 : f32
    %12 = vector.broadcast %cst_6 : f32 to vector<8x56x128xf32>
    %13 = arith.select %11, %8, %12 : vector<8x56x128xi1>, vector<8x56x128xf32>
    %cst_7 = arith.constant dense<0.000000e+00> : vector<8x128xf32>
    %14 = vector.multi_reduction <add>, %13, %cst_7 [1] : vector<8x56x128xf32> to vector<8x128xf32>
    %cst_8 = arith.constant 0.0204081628 : f32
    %15 = vector.broadcast %cst_8 : f32 to vector<8x128xf32>
    %16 = arith.mulf %14, %15 : vector<8x128xf32>
    %17 = arith.truncf %16 : vector<8x128xf32> to vector<8x128xbf16>
    %c0_9 = arith.constant 0 : index
    %c0_10 = arith.constant 0 : index
    %18 = vector.load %arg4[%c0_9, %c0_10] : memref<128x128xbf16, #tpu.memory_space<vmem>>, vector<128x128xbf16>
    %cst_11 = arith.constant dense<0.000000e+00> : vector<8x128xf32>
    %19 = tpu.matmul %17, %18, %cst_11 {dimension_numbers = #tpu.dot_dimension_numbers<[1], [0], [0], [1], [0, 0, 1, 1], [], []>} : vector<8x128xbf16>, vector<128x128xbf16>, vector<8x128xf32> -> vector<8x128xf32>
    %c0_12 = arith.constant 0 : index
    %c0_13 = arith.constant 0 : index
    %20 = vector.load %arg5[%c0_12, %c0_13] : memref<1x128xf32, #tpu.memory_space<vmem>>, vector<1x128xf32>
    %21 = vector.broadcast %20 : vector<1x128xf32> to vector<8x128xf32>
    %22 = arith.addf %19, %21 : vector<8x128xf32>
    %c0_14 = arith.constant 0 : index
    %c0_15 = arith.constant 0 : index
    %23 = vector.load %arg6[%c0_14, %c0_15] : memref<8x128xf32, #tpu.memory_space<vmem>>, vector<8x128xf32>
    tpu.vector_store %arg6[%c0_14, %c0_15], %22 {strides = array<i32>} : memref<8x128xf32, #tpu.memory_space<vmem>>, vector<8x128xf32>,
    return
  }
  func.func @transform_0(%arg0: i32) -> (i32, i32) {
    %c0_i32 = arith.constant 0 : i32
    %c0_i32_0 = arith.constant 0 : i32
    return %arg0, %c0_i32 : i32, i32
  }
  func.func @transform_1(%arg0: i32) -> (i32, i32) {
    %c0_i32 = arith.constant 0 : i32
    %c0_i32_0 = arith.constant 0 : i32
    %c0_i32_1 = arith.constant 0 : i32
    return %c0_i32, %c0_i32_0 : i32, i32
  }
  func.func @transform_2(%arg0: i32) -> (i32, i32) {
    %c0_i32 = arith.constant 0 : i32
    %c0_i32_0 = arith.constant 0 : i32
    %c0_i32_1 = arith.constant 0 : i32
    return %c0_i32, %c0_i32_0 : i32, i32
  }
  func.func @transform_3(%arg0: i32) -> (i32, i32) {
    %c0_i32 = arith.constant 0 : i32
    %c0_i32_0 = arith.constant 0 : i32
    %c0_i32_1 = arith.constant 0 : i32
    return %c0_i32, %c0_i32_0 : i32, i32
  }
  func.func @transform_4(%arg0: i32) -> (i32, i32) {
    %c0_i32 = arith.constant 0 : i32
    %c0_i32_0 = arith.constant 0 : i32
    %c0_i32_1 = arith.constant 0 : i32
    return %c0_i32, %c0_i32_0 : i32, i32
  }
  func.func @transform_5(%arg0: i32) -> (i32, i32) {
    %c0_i32 = arith.constant 0 : i32
    %c0_i32_0 = arith.constant 0 : i32
    return %arg0, %c0_i32 : i32, i32
  }
}

</mosaic_0001>

<llo_original>
// kernel: finetune_forward.1
$region0: #{finetune_forward.1}
  #allocation0 [shape = 'u32[]', space=smem, size = 0x4, offset = 0x4, fixed_abs, tag = 'smem constant byte address 0x4 - core index']
  #allocation1 [shape = 'u32[144,128]{1,0:T(1,128)}', space=vmem, size = 0x12000, scoped, tag = 'internal scratch']
  %s0 = inlined_call_operand.vmem [shape: bf16[896,128], index: 0, kind: input, shape index: {}]
  %s1 = inlined_call_operand.vmem [shape: bf16[128,128], index: 1, kind: input, shape index: {}]
  %s2 = inlined_call_operand.vmem [shape: f32[1,128], index: 2, kind: input, shape index: {}]
  %s3 = inlined_call_operand.vmem [shape: bf16[128,128], index: 3, kind: input, shape index: {}]
  %s4 = inlined_call_operand.vmem [shape: f32[1,128], index: 4, kind: input, shape index: {}]
  %s5 = inlined_call_operand.hbm [shape: f32[16,128], index: 5, kind: output, shape index: {}]
  %s6 = sld [smem:[#allocation0]]
  $region53: #{finetune_forward.1} parent=0
    _
  %s8 = ssub.s32 1, %s6
  %s9 = scalar_select 0, %s8, %s6
  $region1: #{finetune_forward.1} parent=0
    #allocation2 [shape = 'u8[8192]{0}', space=vmem, size = 0x2000, scoped, tag = 'output window, operand 0']
    #allocation3 [shape = 's32[2]{0}', space=sflag, size = 0x8, scoped, tag = 'scoped memory for finetune_forward.1']
    %10 = vsyncpa [#allocation3], 0
    %s11 = scalar_lea.sflag [#allocation3], 1
    %12 = vsyncpa %s11, 0
    loop: start=0, step=1, limit=4
    $region2: #{finetune_forward.1} parent=1 // loop_pre_header
      _
    $region3: #{finetune_forward.1} parent=1 // loop_header
      %s14 = sphi 0, %s18
      %p15 = scmp.ge.s32.totalorder %s14, 4
      %s24 = sphi 0, %s26
      %s27 = sphi 0, %s24
      %s28 = sphi 0, %s27
      %s44 = sphi 0, %s28
      %s48 = sphi 0, %s48
      %s50 = sphi 0, %s48
      %s51 = sphi 0, %s50
      %s65 = sphi 0, %s51
      %s69 = sphi 0, %s69
      %s71 = sphi 0, %s69
      %s72 = sphi 0, %s71
      %s86 = sphi 0, %s72
      %s90 = sphi 0, %s90
      %s92 = sphi 0, %s90
      %s93 = sphi 0, %s92
      %s107 = sphi 0, %s93
      %s111 = sphi 0, %s111
      %s113 = sphi 0, %s111
      %s114 = sphi 0, %s113
      %s128 = sphi 0, %s114
      %s134 = sphi 0, %s136
      %s137 = sphi 0, %s134
      %s138 = sphi 0, %s137
      %s154 = sphi 0, %s138
    $region4: #{finetune_forward.1} parent=1 // loop_header_branch
      %17 = sbr.rel (%p15) target = $region8
    $region5: #{finetune_forward.1} parent=1 // loop_body
      %s19 = ssub.s32 %s14, 1
      %s20 = ssub.s32 %s14, 2
      %s21 = sadd.s32 %s14, 1
      %s22 = ssub.s32 %s14, %s21
      %p23 = scmp.eq.s32.totalorder %s22, 0
      %s25 = sadd.s32 %s24, 1
      %s26 = scalar_select %p23, %s24, %s25
      %p29 = pneg %p23
      %p30 = scmp.eq.s32.totalorder %s14, 1
      %p31 = por %p29, %p30
      %p32 = scmp.ne.s32.totalorder %s24, %s27
      %p33 = scmp.eq.s32.totalorder %s14, 0
      %p34 = por %p32, %p33
      %p35 = scmp.ne.s32.totalorder %s24, %s27
      %p36 = scmp.eq.s32.totalorder %s19, 1
      %p37 = por %p35, %p36
      %p38 = scmp.ne.s32.totalorder %s27, %s28
      %p39 = scmp.eq.s32.totalorder %s19, 0
      %p40 = por %p38, %p39
      %p41 = scmp.ne.s32.totalorder %s27, %s28
      %p42 = scmp.eq.s32.totalorder %s20, 1
      %p43 = por %p41, %p42
      %p45 = scmp.ne.s32.totalorder %s28, %s44
      %p46 = scmp.eq.s32.totalorder %s20, 0
      %p47 = por %p45, %p46
      %s49 = sadd.s32 %s48, 1
      %p52 = scmp.eq.s32.totalorder %s14, 1
      %p53 = scmp.ne.s32.totalorder %s48, %s50
      %p54 = scmp.eq.s32.totalorder %s14, 0
      %p55 = por %p53, %p54
      %p56 = scmp.ne.s32.totalorder %s48, %s50
      %p57 = scmp.eq.s32.totalorder %s19, 1
      %p58 = por %p56, %p57
      %p59 = scmp.ne.s32.totalorder %s50, %s51
      %p60 = scmp.eq.s32.totalorder %s19, 0
      %p61 = por %p59, %p60
      %p62 = scmp.ne.s32.totalorder %s50, %s51
      %p63 = scmp.eq.s32.totalorder %s20, 1
      %p64 = por %p62, %p63
      %p66 = scmp.ne.s32.totalorder %s51, %s65
      %p67 = scmp.eq.s32.totalorder %s20, 0
      %p68 = por %p66, %p67
      %s70 = sadd.s32 %s69, 1
      %p73 = scmp.eq.s32.totalorder %s14, 1
      %p74 = scmp.ne.s32.totalorder %s69, %s71
      %p75 = scmp.eq.s32.totalorder %s14, 0
      %p76 = por %p74, %p75
      %p77 = scmp.ne.s32.totalorder %s69, %s71
      %p78 = scmp.eq.s32.totalorder %s19, 1
      %p79 = por %p77, %p78
      %p80 = scmp.ne.s32.totalorder %s71, %s72
      %p81 = scmp.eq.s32.totalorder %s19, 0
      %p82 = por %p80, %p81
      %p83 = scmp.ne.s32.totalorder %s71, %s72
      %p84 = scmp.eq.s32.totalorder %s20, 1
      %p85 = por %p83, %p84
      %p87 = scmp.ne.s32.totalorder %s72, %s86
      %p88 = scmp.eq.s32.totalorder %s20, 0
      %p89 = por %p87, %p88
      %s91 = sadd.s32 %s90, 1
      %p94 = scmp.eq.s32.totalorder %s14, 1
      %p95 = scmp.ne.s32.totalorder %s90, %s92
      %p96 = scmp.eq.s32.totalorder %s14, 0
      %p97 = por %p95, %p96
      %p98 = scmp.ne.s32.totalorder %s90, %s92
      %p99 = scmp.eq.s32.totalorder %s19, 1
      %p100 = por %p98, %p99
      %p101 = scmp.ne.s32.totalorder %s92, %s93
      %p102 = scmp.eq.s32.totalorder %s19, 0
      %p103 = por %p101, %p102
      %p104 = scmp.ne.s32.totalorder %s92, %s93
      %p105 = scmp.eq.s32.totalorder %s20, 1
      %p106 = por %p104, %p105
      %p108 = scmp.ne.s32.totalorder %s93, %s107
      %p109 = scmp.eq.s32.totalorder %s20, 0
      %p110 = por %p108, %p109
      %s112 = sadd.s32 %s111, 1
      %p115 = scmp.eq.s32.totalorder %s14, 1
      %p116 = scmp.ne.s32.totalorder %s111, %s113
      %p117 = scmp.eq.s32.totalorder %s14, 0
      %p118 = por %p116, %p117
      %p119 = scmp.ne.s32.totalorder %s111, %s113
      %p120 = scmp.eq.s32.totalorder %s19, 1
      %p121 = por %p119, %p120
      %p122 = scmp.ne.s32.totalorder %s113, %s114
      %p123 = scmp.eq.s32.totalorder %s19, 0
      %p124 = por %p122, %p123
      %p125 = scmp.ne.s32.totalorder %s113, %s114
      %p126 = scmp.eq.s32.totalorder %s20, 1
      %p127 = por %p125, %p126
      %p129 = scmp.ne.s32.totalorder %s114, %s128
      %p130 = scmp.eq.s32.totalorder %s20, 0
      %p131 = por %p129, %p130
      %s132 = ssub.s32 %s14, %s21
      %p133 = scmp.eq.s32.totalorder %s132, 0
      %s135 = sadd.s32 %s134, 1
      %s136 = scalar_select %p133, %s134, %s135
      %p139 = pneg %p133
      %p140 = scmp.eq.s32.totalorder %s14, 1
      %p141 = por %p139, %p140
      %p142 = scmp.ne.s32.totalorder %s134, %s137
      %p143 = scmp.eq.s32.totalorder %s14, 0
      %p144 = por %p142, %p143
      %p145 = scmp.ne.s32.totalorder %s134, %s137
      %p146 = scmp.eq.s32.totalorder %s19, 1
      %p147 = por %p145, %p146
      %p148 = scmp.ne.s32.totalorder %s137, %s138
      %p149 = scmp.eq.s32.totalorder %s19, 0
      %p150 = por %p148, %p149
      %p151 = scmp.ne.s32.totalorder %s137, %s138
      %p152 = scmp.eq.s32.totalorder %s20, 1
      %p153 = por %p151, %p152
      %p155 = scmp.ne.s32.totalorder %s138, %s154
      %p156 = scmp.eq.s32.totalorder %s20, 0
      %p157 = por %p155, %p156
      %p158 = scmp.le.s32.totalorder 1, %s14
      %p159 = scmp.lt.s32.totalorder %s14, 3
      %p160 = pnand %p158, %p159
      %p161 = pneg %p160
      // Predicated region
      $region9: #{finetune_forward.1} parent=5 // pred_check
        _
      $region10: #{finetune_forward.1} parent=5 // pred_check_branch
        %163 = sbr.rel (%p160) target = $region12
      $region11: #{finetune_forward.1} parent=5 // pred_region
        %s164 = ssub.s32 %s14, 1
        // Predicated region
        $region13: #{finetune_forward.1} parent=11 // pred_check
          %p165 = pneg %p61
        $region14: #{finetune_forward.1} parent=11 // pred_check_branch
          %167 = sbr.rel (%p165) target = $region16
        $region15: #{finetune_forward.1} parent=11 // pred_region
          _
        $region16: #{finetune_forward.1} parent=11 // pred_fallthru
          _
        // Predicated region
        $region17: #{finetune_forward.1} parent=11 // pred_check
          %p168 = pneg %p82
        $region18: #{finetune_forward.1} parent=11 // pred_check_branch
          %170 = sbr.rel (%p168) target = $region20
        $region19: #{finetune_forward.1} parent=11 // pred_region
          _
        $region20: #{finetune_forward.1} parent=11 // pred_fallthru
          _
        // Predicated region
        $region21: #{finetune_forward.1} parent=11 // pred_check
          %p171 = pneg %p103
        $region22: #{finetune_forward.1} parent=11 // pred_check_branch
          %173 = sbr.rel (%p171) target = $region24
        $region23: #{finetune_forward.1} parent=11 // pred_region
          _
        $region24: #{finetune_forward.1} parent=11 // pred_fallthru
          _
        // Predicated region
        $region25: #{finetune_forward.1} parent=11 // pred_check
          %p174 = pneg %p124
        $region26: #{finetune_forward.1} parent=11 // pred_check_branch
          %176 = sbr.rel (%p174) target = $region28
        $region27: #{finetune_forward.1} parent=11 // pred_region
          _
        $region28: #{finetune_forward.1} parent=11 // pred_fallthru
          _
      $region12: #{finetune_forward.1} parent=5 // pred_fallthru
        _
      %p177 = scmp.lt.s32.totalorder %s14, 2
      // Predicated region
      $region29: #{finetune_forward.1} parent=5 // pred_check
        %p178 = pneg %p177
      $region30: #{finetune_forward.1} parent=5 // pred_check_branch
        %180 = sbr.rel (%p178) target = $region32
      $region31: #{finetune_forward.1} parent=5 // pred_region
        // Predicated region
        $region33: #{finetune_forward.1} parent=31 // pred_check
          %p181 = pneg %p34
        $region34: #{finetune_forward.1} parent=31 // pred_check_branch
          %183 = sbr.rel (%p181) target = $region36
        $region35: #{finetune_forward.1} parent=31 // pred_region
          %s184 = smul.u32 56, %s14
          %p185 = scmp.lt.s32.totalorder %s184, 111
          %s186 = scalar_select %p185, %s184, 111
          %s187 = smul.addr %s186, 4
          %s188 = scalar_lea.vmem %s0, %s187
          %s189 = smul.u32 56, %s14
        $region36: #{finetune_forward.1} parent=31 // pred_fallthru
          _
      $region32: #{finetune_forward.1} parent=5 // pred_fallthru
        _
      %p190 = scmp.le.s32.totalorder 1, %s14
      %p191 = scmp.lt.s32.totalorder %s14, 3
      %p192 = pnand %p190, %p191
      %p193 = pneg %p192
      // Predicated region
      $region37: #{finetune_forward.1} parent=5 // pred_check
        _
      $region38: #{finetune_forward.1} parent=5 // pred_check_branch
        %195 = sbr.rel (%p192) target = $region40
      $region39: #{finetune_forward.1} parent=5 // pred_region
        %s196 = ssub.s32 %s14, 1
        %s197 = smul.u32 56, %s19
        %p198 = scmp.lt.s32.totalorder %s197, 111
        %s199 = scalar_select %p198, %s197, 111
        %s200 = smul.addr %s199, 4
        %s201 = scalar_lea.vmem %s0, %s200
        %p202 = pneg %p40
        %p203 = pneg %p37
        %p204 = pneg %p61
        %p205 = pneg %p58
        %p206 = pneg %p82
        %p207 = pneg %p79
        %p208 = pneg %p103
        %p209 = pneg %p100
        %p210 = pneg %p124
        %p211 = pneg %p121
        %p212 = pneg %p150
        %p213 = pneg %p147
        %s214 = sand.u32 %s137, 1
        %s215 = scalar_lea.sflag [#allocation3], %s214
        %s216 = sand.u32 %s137, 1
        %s217 = smul.addr %s216, 8
        %s218 = scalar_lea.vmem [#allocation2], %s217
        %s219 = smul.u32 56, %s19
        %p220 = scmp.lt.s32.totalorder %s219, 111
        %s221 = scalar_select %p220, %s219, 111
        %s222 = smul.addr %s221, 4
        %s223 = scalar_lea.vmem %s0, %s222
        %s224 = smul.u32 56, %s19
        %v226 = vld [vmem:[%s223] sm:$0xf]
        %v227 = vld [vmem:[%s223 + $0x4] sm:$0xf]
        %v228 = vld [vmem:[%s223 + $0x8] sm:$0xf]
        %v229 = vld [vmem:[%s223 + $0xc] sm:$0xf]
        %v230 = vld [vmem:[%s223 + $0x10] sm:$0xf]
        %v231 = vld [vmem:[%s223 + $0x14] sm:$0xf]
        %v232 = vld [vmem:[%s223 + $0x18] sm:$0xf]
        %v233 = vld [vmem:[%s223 + $0x1c] sm:$0xf]
        %v234 = vld [vmem:[%s223 + $0x20] sm:$0xf]
        %v235 = vld [vmem:[%s223 + $0x24] sm:$0xf]
        %v236 = vld [vmem:[%s223 + $0x28] sm:$0xf]
        %v237 = vld [vmem:[%s223 + $0x2c] sm:$0xf]
        %v238 = vld [vmem:[%s223 + $0x30] sm:$0xf]
        %v239 = vld [vmem:[%s223 + $0x34] sm:$0xf]
        %v240 = vld [vmem:[%s223 + $0x38] sm:$0xf]
        %v241 = vld [vmem:[%s223 + $0x3c] sm:$0xf]
        %v242 = vld [vmem:[%s223 + $0x40] sm:$0xf]
        %v243 = vld [vmem:[%s223 + $0x44] sm:$0xf]
        %v244 = vld [vmem:[%s223 + $0x48] sm:$0xf]
        %v245 = vld [vmem:[%s223 + $0x4c] sm:$0xf]
        %v246 = vld [vmem:[%s223 + $0x50] sm:$0xf]
        %v247 = vld [vmem:[%s223 + $0x54] sm:$0xf]
        %v248 = vld [vmem:[%s223 + $0x58] sm:$0xf]
        %v249 = vld [vmem:[%s223 + $0x5c] sm:$0xf]
        %v250 = vld [vmem:[%s223 + $0x60] sm:$0xf]
        %v251 = vld [vmem:[%s223 + $0x64] sm:$0xf]
        %v252 = vld [vmem:[%s223 + $0x68] sm:$0xf]
        %v253 = vld [vmem:[%s223 + $0x6c] sm:$0xf]
        %v254 = vld [vmem:[%s223 + $0x70] sm:$0xf]
        %v255 = vld [vmem:[%s223 + $0x74] sm:$0xf]
        %v256 = vld [vmem:[%s223 + $0x78] sm:$0xf]
        %v257 = vld [vmem:[%s223 + $0x7c] sm:$0xf]
        %v258 = vld [vmem:[%s223 + $0x80] sm:$0xf]
        %v259 = vld [vmem:[%s223 + $0x84] sm:$0xf]
        %v260 = vld [vmem:[%s223 + $0x88] sm:$0xf]
        %v261 = vld [vmem:[%s223 + $0x8c] sm:$0xf]
        %v262 = vld [vmem:[%s223 + $0x90] sm:$0xf]
        %v263 = vld [vmem:[%s223 + $0x94] sm:$0xf]
        %v264 = vld [vmem:[%s223 + $0x98] sm:$0xf]
        %v265 = vld [vmem:[%s223 + $0x9c] sm:$0xf]
        %v266 = vld [vmem:[%s223 + $0xa0] sm:$0xf]
        %v267 = vld [vmem:[%s223 + $0xa4] sm:$0xf]
        %v268 = vld [vmem:[%s223 + $0xa8] sm:$0xf]
        %v269 = vld [vmem:[%s223 + $0xac] sm:$0xf]
        %v270 = vld [vmem:[%s223 + $0xb0] sm:$0xf]
        %v271 = vld [vmem:[%s223 + $0xb4] sm:$0xf]
        %v272 = vld [vmem:[%s223 + $0xb8] sm:$0xf]
        %v273 = vld [vmem:[%s223 + $0xbc] sm:$0xf]
        %v274 = vld [vmem:[%s223 + $0xc0] sm:$0xf]
        %v275 = vld [vmem:[%s223 + $0xc4] sm:$0xf]
        %v276 = vld [vmem:[%s223 + $0xc8] sm:$0xf]
        %v277 = vld [vmem:[%s223 + $0xcc] sm:$0xf]
        %v278 = vld [vmem:[%s223 + $0xd0] sm:$0xf]
        %v279 = vld [vmem:[%s223 + $0xd4] sm:$0xf]
        %v280 = vld [vmem:[%s223 + $0xd8] sm:$0xf]
        %v281 = vld [vmem:[%s223 + $0xdc] sm:$0xf]
        %v282 = vld [vmem:[%s1] sm:$0xf]
        %v283 = vld [vmem:[%s1 + $0x4] sm:$0xf]
        %v284 = vld [vmem:[%s1 + $0x8] sm:$0xf]
        %v285 = vld [vmem:[%s1 + $0xc] sm:$0xf]
        %v286 = vld [vmem:[%s1 + $0x10] sm:$0xf]
        %v287 = vld [vmem:[%s1 + $0x14] sm:$0xf]
        %v288 = vld [vmem:[%s1 + $0x18] sm:$0xf]
        %v289 = vld [vmem:[%s1 + $0x1c] sm:$0xf]
        %v290 = vld [vmem:[%s1 + $0x20] sm:$0xf]
        %v291 = vld [vmem:[%s1 + $0x24] sm:$0xf]
        %v292 = vld [vmem:[%s1 + $0x28] sm:$0xf]
        %v293 = vld [vmem:[%s1 + $0x2c] sm:$0xf]
        %v294 = vld [vmem:[%s1 + $0x30] sm:$0xf]
        %v295 = vld [vmem:[%s1 + $0x34] sm:$0xf]
        %v296 = vld [vmem:[%s1 + $0x38] sm:$0xf]
        %v297 = vld [vmem:[%s1 + $0x3c] sm:$0xf]
        %v298 = vld [vmem:[%s2] sm:$0x1]
        %v300 = vlaneseq
        %v301 = vshrl.u32 %v300, 7
        %v302 = vsub.s32 0, %v301
        %v303 = vrot.slane %v298, %v302
        %v361 = vunpack.c.l.b16 %v226
        %v362 = vunpack.c.l.b16 %v227
        %v363 = vunpack.c.l.b16 %v228
        %v364 = vunpack.c.l.b16 %v229
        %v365 = vunpack.c.l.b16 %v230
        %v366 = vunpack.c.l.b16 %v231
        %v367 = vunpack.c.l.b16 %v232
        %v368 = vunpack.c.l.b16 %v233
        %v369 = vunpack.c.l.b16 %v234
        %v370 = vunpack.c.l.b16 %v235
        %v371 = vunpack.c.l.b16 %v236
        %v372 = vunpack.c.l.b16 %v237
        %v373 = vunpack.c.l.b16 %v238
        %v374 = vunpack.c.l.b16 %v239
        %v375 = vunpack.c.l.b16 %v240
        %v376 = vunpack.c.l.b16 %v241
        %v377 = vunpack.c.l.b16 %v242
        %v378 = vunpack.c.l.b16 %v243
        %v379 = vunpack.c.l.b16 %v244
        %v380 = vunpack.c.l.b16 %v245
        %v381 = vunpack.c.l.b16 %v246
        %v382 = vunpack.c.l.b16 %v247
        %v383 = vunpack.c.l.b16 %v248
        %v384 = vunpack.c.l.b16 %v249
        %v385 = vunpack.c.l.b16 %v250
        %v386 = vunpack.c.l.b16 %v251
        %v387 = vunpack.c.l.b16 %v252
        %v388 = vunpack.c.l.b16 %v253
        %v389 = vunpack.c.l.b16 %v254
        %v390 = vunpack.c.l.b16 %v255
        %v391 = vunpack.c.l.b16 %v256
        %v392 = vunpack.c.l.b16 %v257
        %v393 = vunpack.c.l.b16 %v258
        %v394 = vunpack.c.l.b16 %v259
        %v395 = vunpack.c.l.b16 %v260
        %v396 = vunpack.c.l.b16 %v261
        %v397 = vunpack.c.l.b16 %v262
        %v398 = vunpack.c.l.b16 %v263
        %v399 = vunpack.c.l.b16 %v264
        %v400 = vunpack.c.l.b16 %v265
        %v401 = vunpack.c.l.b16 %v266
        %v402 = vunpack.c.l.b16 %v267
        %v403 = vunpack.c.l.b16 %v268
        %v404 = vunpack.c.l.b16 %v269
        %v405 = vunpack.c.l.b16 %v270
        %v406 = vunpack.c.l.b16 %v271
        %v407 = vunpack.c.l.b16 %v272
        %v408 = vunpack.c.l.b16 %v273
        %v409 = vunpack.c.l.b16 %v274
        %v410 = vunpack.c.l.b16 %v275
        %v411 = vunpack.c.l.b16 %v276
        %v412 = vunpack.c.l.b16 %v277
        %v413 = vunpack.c.l.b16 %v278
        %v414 = vunpack.c.l.b16 %v279
        %v415 = vunpack.c.l.b16 %v280
        %v416 = vunpack.c.l.b16 %v281
        %v417 = vpack.c.b16 %v362, %v361
        %v418 = vpack.c.b16 %v364, %v363
        %v419 = vpack.c.b16 %v366, %v365
        %v420 = vpack.c.b16 %v368, %v367
        %v421 = vpack.c.b16 %v370, %v369
        %v422 = vpack.c.b16 %v372, %v371
        %v423 = vpack.c.b16 %v374, %v373
        %v424 = vpack.c.b16 %v376, %v375
        %v425 = vpack.c.b16 %v378, %v377
        %v426 = vpack.c.b16 %v380, %v379
        %v427 = vpack.c.b16 %v382, %v381
        %v428 = vpack.c.b16 %v384, %v383
        %v429 = vpack.c.b16 %v386, %v385
        %v430 = vpack.c.b16 %v388, %v387
        %v431 = vpack.c.b16 %v390, %v389
        %v432 = vpack.c.b16 %v392, %v391
        %v433 = vpack.c.b16 %v394, %v393
        %v434 = vpack.c.b16 %v396, %v395
        %v435 = vpack.c.b16 %v398, %v397
        %v436 = vpack.c.b16 %v400, %v399
        %v437 = vpack.c.b16 %v402, %v401
        %v438 = vpack.c.b16 %v404, %v403
        %v439 = vpack.c.b16 %v406, %v405
        %v440 = vpack.c.b16 %v408, %v407
        %v441 = vpack.c.b16 %v410, %v409
        %v442 = vpack.c.b16 %v412, %v411
        %v443 = vpack.c.b16 %v414, %v413
        %v444 = vpack.c.b16 %v416, %v415
        %v489 = vunpack.c.l.b16 %v282
        %v490 = vunpack.c.l.b16 %v283
        %v491 = vunpack.c.l.b16 %v284
        %v492 = vunpack.c.l.b16 %v285
        %v493 = vunpack.c.l.b16 %v286
        %v494 = vunpack.c.l.b16 %v287
        %v495 = vunpack.c.l.b16 %v288
        %v496 = vunpack.c.l.b16 %v289
        %v497 = vunpack.c.l.b16 %v290
        %v498 = vunpack.c.l.b16 %v291
        %v499 = vunpack.c.l.b16 %v292
        %v500 = vunpack.c.l.b16 %v293
        %v501 = vunpack.c.l.b16 %v294
        %v502 = vunpack.c.l.b16 %v295
        %v503 = vunpack.c.l.b16 %v296
        %v504 = vunpack.c.l.b16 %v297
        %v505 = vpack.c.b16 %v490, %v489
        %v506 = vpack.c.b16 %v492, %v491
        %v507 = vpack.c.b16 %v494, %v493
        %v508 = vpack.c.b16 %v496, %v495
        %v509 = vpack.c.b16 %v498, %v497
        %v510 = vpack.c.b16 %v500, %v499
        %v511 = vpack.c.b16 %v502, %v501
        %v512 = vpack.c.b16 %v504, %v503
        %521 = vmatprep.subr.bf16.mxu0 0
        %522 = vmatpush1.bf16.msra.mxu0 %v512
        %523 = vmatprep.subr.bf16.mxu0 0
        %524 = vmatpush1.bf16.msra.mxu0 %v511
        %525 = vmatprep.subr.bf16.mxu0 0
        %526 = vmatpush1.bf16.msra.mxu0 %v510
        %527 = vmatprep.subr.bf16.mxu0 0
        %528 = vmatpush1.bf16.msra.mxu0 %v509
        %529 = vmatprep.subr.bf16.mxu0 0
        %530 = vmatpush1.bf16.msra.mxu0 %v508
        %531 = vmatprep.subr.bf16.mxu0 0
        %532 = vmatpush1.bf16.msra.mxu0 %v507
        %533 = vmatprep.subr.bf16.mxu0 0
        %534 = vmatpush1.bf16.msra.mxu0 %v506
        %535 = vmatprep.subr.bf16.mxu0 0
        %536 = vmatpush1.bf16.msra.mxu0 %v505
        %537 = vmatprep.subr.bf16.mxu0 0
        %538 = vmatpush2.bf16.msra.mxu0 0
        %539 = vmatprep.subr.bf16.mxu0 0
        %540 = vmatpush2.bf16.msra.mxu0 0
        %541 = vmatprep.subr.bf16.mxu0 0
        %542 = vmatpush2.bf16.msra.mxu0 0
        %543 = vmatprep.subr.bf16.mxu0 0
        %544 = vmatpush2.bf16.msra.mxu0 0
        %545 = vmatprep.subr.bf16.mxu0 0
        %546 = vmatpush2.bf16.msra.mxu0 0
        %547 = vmatprep.subr.bf16.mxu0 0
        %548 = vmatpush2.bf16.msra.mxu0 0
        %549 = vmatprep.subr.bf16.mxu0 0
        %550 = vmatpush2.bf16.msra.mxu0 0
        %551 = vmatprep.subr.bf16.mxu0 0
        %552 = vmatpush2.bf16.msra.mxu0 0
        %553 = vmatprep.mubr.bf16.mxu0 0
        %554 = vmatmul.mubr.bf16.gmra.mxu0 %v417
        %v555 = vpop.f32.mrf.mxu0
        %v556 = vadd.f32 %v303, %v555
        %v557 = vpop.f32.mrf.mxu0
        %v558 = vpop.f32.mrf.mxu0
        %v559 = vadd.f32 %v303, %v558
        %v560 = vpop.f32.mrf.mxu0
        %561 = vmatprep.mubr.bf16.mxu0 0
        %562 = vmatmul.mubr.bf16.gmra.mxu0 %v418
        %v563 = vpop.f32.mrf.mxu0
        %v564 = vadd.f32 %v303, %v563
        %v565 = vpop.f32.mrf.mxu0
        %v566 = vpop.f32.mrf.mxu0
        %v567 = vadd.f32 %v303, %v566
        %v568 = vpop.f32.mrf.mxu0
        %569 = vmatprep.mubr.bf16.mxu0 0
        %570 = vmatmul.mubr.bf16.gmra.mxu0 %v419
        %v571 = vpop.f32.mrf.mxu0
        %v572 = vadd.f32 %v303, %v571
        %v573 = vpop.f32.mrf.mxu0
        %v574 = vpop.f32.mrf.mxu0
        %v575 = vadd.f32 %v303, %v574
        %v576 = vpop.f32.mrf.mxu0
        %577 = vmatprep.mubr.bf16.mxu0 0
        %578 = vmatmul.mubr.bf16.gmra.mxu0 %v420
        %v579 = vpop.f32.mrf.mxu0
        %v580 = vadd.f32 %v303, %v579
        %v581 = vpop.f32.mrf.mxu0
        %v582 = vpop.f32.mrf.mxu0
        %v583 = vadd.f32 %v303, %v582
        %v584 = vpop.f32.mrf.mxu0
        %585 = vmatprep.mubr.bf16.mxu0 0
        %586 = vmatmul.mubr.bf16.gmra.mxu0 %v421
        %v587 = vpop.f32.mrf.mxu0
        %v588 = vadd.f32 %v303, %v587
        %v589 = vpop.f32.mrf.mxu0
        %v590 = vpop.f32.mrf.mxu0
        %v591 = vadd.f32 %v303, %v590
        %v592 = vpop.f32.mrf.mxu0
        %593 = vmatprep.mubr.bf16.mxu0 0
        %594 = vmatmul.mubr.bf16.gmra.mxu0 %v422
        %v595 = vpop.f32.mrf.mxu0
        %v596 = vadd.f32 %v303, %v595
        %v597 = vpop.f32.mrf.mxu0
        %v598 = vpop.f32.mrf.mxu0
        %v599 = vadd.f32 %v303, %v598
        %v600 = vpop.f32.mrf.mxu0
        %601 = vmatprep.mubr.bf16.mxu0 0
        %602 = vmatmul.mubr.bf16.gmra.mxu0 %v423
        %v603 = vpop.f32.mrf.mxu0
        %v604 = vadd.f32 %v303, %v603
        %v605 = vpop.f32.mrf.mxu0
        %v606 = vpop.f32.mrf.mxu0
        %v607 = vadd.f32 %v303, %v606
        %v608 = vpop.f32.mrf.mxu0
        %609 = vmatprep.mubr.bf16.mxu0 0
        %610 = vmatmul.mubr.bf16.gmra.mxu0 %v424
        %v611 = vpop.f32.mrf.mxu0
        %v612 = vadd.f32 %v303, %v611
        %v613 = vpop.f32.mrf.mxu0
        %v614 = vpop.f32.mrf.mxu0
        %v615 = vadd.f32 %v303, %v614
        %v616 = vpop.f32.mrf.mxu0
        %617 = vmatprep.mubr.bf16.mxu0 0
        %618 = vmatmul.mubr.bf16.gmra.mxu0 %v425
        %v619 = vpop.f32.mrf.mxu0
        %v620 = vadd.f32 %v303, %v619
        %v621 = vpop.f32.mrf.mxu0
        %v622 = vpop.f32.mrf.mxu0
        %v623 = vadd.f32 %v303, %v622
        %v624 = vpop.f32.mrf.mxu0
        %625 = vmatprep.mubr.bf16.mxu0 0
        %626 = vmatmul.mubr.bf16.gmra.mxu0 %v426
        %v627 = vpop.f32.mrf.mxu0
        %v628 = vadd.f32 %v303, %v627
        %v629 = vpop.f32.mrf.mxu0
        %v630 = vpop.f32.mrf.mxu0
        %v631 = vadd.f32 %v303, %v630
        %v632 = vpop.f32.mrf.mxu0
        %633 = vmatprep.mubr.bf16.mxu0 0
        %634 = vmatmul.mubr.bf16.gmra.mxu0 %v427
        %v635 = vpop.f32.mrf.mxu0
        %v636 = vadd.f32 %v303, %v635
        %v637 = vpop.f32.mrf.mxu0
        %v638 = vpop.f32.mrf.mxu0
        %v639 = vadd.f32 %v303, %v638
        %v640 = vpop.f32.mrf.mxu0
        %641 = vmatprep.mubr.bf16.mxu0 0
        %642 = vmatmul.mubr.bf16.gmra.mxu0 %v428
        %v643 = vpop.f32.mrf.mxu0
        %v644 = vadd.f32 %v303, %v643
        %v645 = vpop.f32.mrf.mxu0
        %v646 = vpop.f32.mrf.mxu0
        %v647 = vadd.f32 %v303, %v646
        %v648 = vpop.f32.mrf.mxu0
        %649 = vmatprep.mubr.bf16.mxu0 0
        %650 = vmatmul.mubr.bf16.gmra.mxu0 %v429
        %v651 = vpop.f32.mrf.mxu0
        %v652 = vadd.f32 %v303, %v651
        %v653 = vpop.f32.mrf.mxu0
        %v654 = vpop.f32.mrf.mxu0
        %v655 = vadd.f32 %v303, %v654
        %v656 = vpop.f32.mrf.mxu0
        %657 = vmatprep.mubr.bf16.mxu0 0
        %658 = vmatmul.mubr.bf16.gmra.mxu0 %v430
        %v659 = vpop.f32.mrf.mxu0
        %v660 = vadd.f32 %v303, %v659
        %v661 = vpop.f32.mrf.mxu0
        %v662 = vpop.f32.mrf.mxu0
        %v663 = vadd.f32 %v303, %v662
        %v664 = vpop.f32.mrf.mxu0
        %665 = vmatprep.mubr.bf16.mxu0 0
        %666 = vmatmul.mubr.bf16.gmra.mxu0 %v431
        %v667 = vpop.f32.mrf.mxu0
        %v668 = vadd.f32 %v303, %v667
        %v669 = vpop.f32.mrf.mxu0
        %v670 = vpop.f32.mrf.mxu0
        %v671 = vadd.f32 %v303, %v670
        %v672 = vpop.f32.mrf.mxu0
        %673 = vmatprep.mubr.bf16.mxu0 0
        %674 = vmatmul.mubr.bf16.gmra.mxu0 %v432
        %v675 = vpop.f32.mrf.mxu0
        %v676 = vadd.f32 %v303, %v675
        %v677 = vpop.f32.mrf.mxu0
        %v678 = vpop.f32.mrf.mxu0
        %v679 = vadd.f32 %v303, %v678
        %v680 = vpop.f32.mrf.mxu0
        %681 = vmatprep.mubr.bf16.mxu0 0
        %682 = vmatmul.mubr.bf16.gmra.mxu0 %v433
        %v683 = vpop.f32.mrf.mxu0
        %v684 = vadd.f32 %v303, %v683
        %v685 = vpop.f32.mrf.mxu0
        %v686 = vpop.f32.mrf.mxu0
        %v687 = vadd.f32 %v303, %v686
        %v688 = vpop.f32.mrf.mxu0
        %689 = vmatprep.mubr.bf16.mxu0 0
        %690 = vmatmul.mubr.bf16.gmra.mxu0 %v434
        %v691 = vpop.f32.mrf.mxu0
        %v692 = vadd.f32 %v303, %v691
        %v693 = vpop.f32.mrf.mxu0
        %v694 = vpop.f32.mrf.mxu0
        %v695 = vadd.f32 %v303, %v694
        %v696 = vpop.f32.mrf.mxu0
        %697 = vmatprep.mubr.bf16.mxu0 0
        %698 = vmatmul.mubr.bf16.gmra.mxu0 %v435
        %v699 = vpop.f32.mrf.mxu0
        %v700 = vadd.f32 %v303, %v699
        %v701 = vpop.f32.mrf.mxu0
        %v702 = vpop.f32.mrf.mxu0
        %v703 = vadd.f32 %v303, %v702
        %v704 = vpop.f32.mrf.mxu0
        %705 = vmatprep.mubr.bf16.mxu0 0
        %706 = vmatmul.mubr.bf16.gmra.mxu0 %v436
        %v707 = vpop.f32.mrf.mxu0
        %v708 = vadd.f32 %v303, %v707
        %v709 = vpop.f32.mrf.mxu0
        %v710 = vpop.f32.mrf.mxu0
        %v711 = vadd.f32 %v303, %v710
        %v712 = vpop.f32.mrf.mxu0
        %713 = vmatprep.mubr.bf16.mxu0 0
        %714 = vmatmul.mubr.bf16.gmra.mxu0 %v437
        %v715 = vpop.f32.mrf.mxu0
        %v716 = vadd.f32 %v303, %v715
        %v717 = vpop.f32.mrf.mxu0
        %v718 = vpop.f32.mrf.mxu0
        %v719 = vadd.f32 %v303, %v718
        %v720 = vpop.f32.mrf.mxu0
        %721 = vmatprep.mubr.bf16.mxu0 0
        %722 = vmatmul.mubr.bf16.gmra.mxu0 %v438
        %v723 = vpop.f32.mrf.mxu0
        %v724 = vadd.f32 %v303, %v723
        %v725 = vpop.f32.mrf.mxu0
        %v726 = vpop.f32.mrf.mxu0
        %v727 = vadd.f32 %v303, %v726
        %v728 = vpop.f32.mrf.mxu0
        %729 = vmatprep.mubr.bf16.mxu0 0
        %730 = vmatmul.mubr.bf16.gmra.mxu0 %v439
        %v731 = vpop.f32.mrf.mxu0
        %v732 = vadd.f32 %v303, %v731
        %v733 = vpop.f32.mrf.mxu0
        %v734 = vpop.f32.mrf.mxu0
        %v735 = vadd.f32 %v303, %v734
        %v736 = vpop.f32.mrf.mxu0
        %737 = vmatprep.mubr.bf16.mxu0 0
        %738 = vmatmul.mubr.bf16.gmra.mxu0 %v440
        %v739 = vpop.f32.mrf.mxu0
        %v740 = vadd.f32 %v303, %v739
        %v741 = vpop.f32.mrf.mxu0
        %v742 = vpop.f32.mrf.mxu0
        %v743 = vadd.f32 %v303, %v742
        %v744 = vpop.f32.mrf.mxu0
        %745 = vmatprep.mubr.bf16.mxu0 0
        %746 = vmatmul.mubr.bf16.gmra.mxu0 %v441
        %v747 = vpop.f32.mrf.mxu0
        %v748 = vadd.f32 %v303, %v747
        %v749 = vpop.f32.mrf.mxu0
        %v750 = vpop.f32.mrf.mxu0
        %v751 = vadd.f32 %v303, %v750
        %v752 = vpop.f32.mrf.mxu0
        %753 = vmatprep.mubr.bf16.mxu0 0
        %754 = vmatmul.mubr.bf16.gmra.mxu0 %v442
        %v755 = vpop.f32.mrf.mxu0
        %v756 = vadd.f32 %v303, %v755
        %v757 = vpop.f32.mrf.mxu0
        %v758 = vpop.f32.mrf.mxu0
        %v759 = vadd.f32 %v303, %v758
        %v760 = vpop.f32.mrf.mxu0
        %761 = vmatprep.mubr.bf16.mxu0 0
        %762 = vmatmul.mubr.bf16.gmra.mxu0 %v443
        %v763 = vpop.f32.mrf.mxu0
        %v764 = vadd.f32 %v303, %v763
        %v765 = vpop.f32.mrf.mxu0
        %v766 = vpop.f32.mrf.mxu0
        %v767 = vadd.f32 %v303, %v766
        %v768 = vpop.f32.mrf.mxu0
        %769 = vmatprep.mubr.bf16.mxu0 0
        %770 = vmatmul.mubr.bf16.gmra.mxu0 %v444
        %v771 = vpop.f32.mrf.mxu0
        %v772 = vadd.f32 %v303, %v771
        %v773 = vpop.f32.mrf.mxu0
        %v774 = vpop.f32.mrf.mxu0
        %v775 = vadd.f32 %v303, %v774
        %v776 = vpop.f32.mrf.mxu0
        %777 = vdwg.mxu0
        %v778 = vmax.f32 %v556, 0.0
        %v779 = vmax.f32 %v559, 0.0
        %v780 = vmax.f32 %v564, 0.0
        %v781 = vmax.f32 %v567, 0.0
        %v782 = vmax.f32 %v572, 0.0
        %v783 = vmax.f32 %v575, 0.0
        %v784 = vmax.f32 %v580, 0.0
        %v785 = vmax.f32 %v583, 0.0
        %v786 = vmax.f32 %v588, 0.0
        %v787 = vmax.f32 %v591, 0.0
        %v788 = vmax.f32 %v596, 0.0
        %v789 = vmax.f32 %v599, 0.0
        %v790 = vmax.f32 %v604, 0.0
        %v791 = vmax.f32 %v607, 0.0
        %v792 = vmax.f32 %v612, 0.0
        %v793 = vmax.f32 %v615, 0.0
        %v794 = vmax.f32 %v620, 0.0
        %v795 = vmax.f32 %v623, 0.0
        %v796 = vmax.f32 %v628, 0.0
        %v797 = vmax.f32 %v631, 0.0
        %v798 = vmax.f32 %v636, 0.0
        %v799 = vmax.f32 %v639, 0.0
        %v800 = vmax.f32 %v644, 0.0
        %v801 = vmax.f32 %v647, 0.0
        %v802 = vmax.f32 %v652, 0.0
        %v803 = vmax.f32 %v655, 0.0
        %v804 = vmax.f32 %v660, 0.0
        %v805 = vmax.f32 %v663, 0.0
        %v806 = vmax.f32 %v668, 0.0
        %v807 = vmax.f32 %v671, 0.0
        %v808 = vmax.f32 %v676, 0.0
        %v809 = vmax.f32 %v679, 0.0
        %v810 = vmax.f32 %v684, 0.0
        %v811 = vmax.f32 %v687, 0.0
        %v812 = vmax.f32 %v692, 0.0
        %v813 = vmax.f32 %v695, 0.0
        %v814 = vmax.f32 %v700, 0.0
        %v815 = vmax.f32 %v703, 0.0
        %v816 = vmax.f32 %v708, 0.0
        %v817 = vmax.f32 %v711, 0.0
        %v818 = vmax.f32 %v716, 0.0
        %v819 = vmax.f32 %v719, 0.0
        %v820 = vmax.f32 %v724, 0.0
        %v821 = vmax.f32 %v727, 0.0
        %v822 = vmax.f32 %v732, 0.0
        %v823 = vmax.f32 %v735, 0.0
        %v824 = vmax.f32 %v740, 0.0
        %v825 = vmax.f32 %v743, 0.0
        %v826 = vmax.f32 %v748, 0.0
        %v827 = vmax.f32 %v751, 0.0
        %v828 = vmax.f32 %v756, 0.0
        %v829 = vmax.f32 %v759, 0.0
        %v830 = vmax.f32 %v764, 0.0
        %v831 = vmax.f32 %v767, 0.0
        %v832 = vmax.f32 %v772, 0.0
        %v833 = vmax.f32 %v775, 0.0
        %v834 = vlaneseq
        %v835 = vshrl.u32 %v834, 7
        %v836 = vadd.s32 %v835, 8
        %v837 = vadd.s32 %v835, 16
        %v838 = vadd.s32 %v835, 24
        %v839 = vadd.s32 %v835, 32
        %v840 = vadd.s32 %v835, 40
        %v841 = vadd.s32 %v835, 48
        %vm842 = vcmp.lt.s32.totalorder %v835, 49
        %vm843 = vcmp.lt.s32.totalorder %v836, 49
        %vm844 = vcmp.lt.s32.totalorder %v837, 49
        %vm845 = vcmp.lt.s32.totalorder %v838, 49
        %vm846 = vcmp.lt.s32.totalorder %v839, 49
        %vm847 = vcmp.lt.s32.totalorder %v840, 49
        %vm848 = vcmp.lt.s32.totalorder %v841, 49
        %v849 = vsel %vm842, %v778, 0.0
        %v850 = vsel %vm843, %v779, 0.0
        %v851 = vsel %vm844, %v780, 0.0
        %v852 = vsel %vm845, %v781, 0.0
        %v853 = vsel %vm846, %v782, 0.0
        %v854 = vsel %vm847, %v783, 0.0
        %v855 = vsel %vm848, %v784, 0.0
        %v856 = vsel %vm842, %v785, 0.0
        %v857 = vsel %vm843, %v786, 0.0
        %v858 = vsel %vm844, %v787, 0.0
        %v859 = vsel %vm845, %v788, 0.0
        %v860 = vsel %vm846, %v789, 0.0
        %v861 = vsel %vm847, %v790, 0.0
        %v862 = vsel %vm848, %v791, 0.0
        %v863 = vsel %vm842, %v792, 0.0
        %v864 = vsel %vm843, %v793, 0.0
        %v865 = vsel %vm844, %v794, 0.0
        %v866 = vsel %vm845, %v795, 0.0
        %v867 = vsel %vm846, %v796, 0.0
        %v868 = vsel %vm847, %v797, 0.0
        %v869 = vsel %vm848, %v798, 0.0
        %v870 = vsel %vm842, %v799, 0.0
        %v871 = vsel %vm843, %v800, 0.0
        %v872 = vsel %vm844, %v801, 0.0
        %v873 = vsel %vm845, %v802, 0.0
        %v874 = vsel %vm846, %v803, 0.0
        %v875 = vsel %vm847, %v804, 0.0
        %v876 = vsel %vm848, %v805, 0.0
        %v877 = vsel %vm842, %v806, 0.0
        %v878 = vsel %vm843, %v807, 0.0
        %v879 = vsel %vm844, %v808, 0.0
        %v880 = vsel %vm845, %v809, 0.0
        %v881 = vsel %vm846, %v810, 0.0
        %v882 = vsel %vm847, %v811, 0.0
        %v883 = vsel %vm848, %v812, 0.0
        %v884 = vsel %vm842, %v813, 0.0
        %v885 = vsel %vm843, %v814, 0.0
        %v886 = vsel %vm844, %v815, 0.0
        %v887 = vsel %vm845, %v816, 0.0
        %v888 = vsel %vm846, %v817, 0.0
        %v889 = vsel %vm847, %v818, 0.0
        %v890 = vsel %vm848, %v819, 0.0
        %v891 = vsel %vm842, %v820, 0.0
        %v892 = vsel %vm843, %v821, 0.0
        %v893 = vsel %vm844, %v822, 0.0
        %v894 = vsel %vm845, %v823, 0.0
        %v895 = vsel %vm846, %v824, 0.0
        %v896 = vsel %vm847, %v825, 0.0
        %v897 = vsel %vm848, %v826, 0.0
        %v898 = vsel %vm842, %v827, 0.0
        %v899 = vsel %vm843, %v828, 0.0
        %v900 = vsel %vm844, %v829, 0.0
        %v901 = vsel %vm845, %v830, 0.0
        %v902 = vsel %vm846, %v831, 0.0
        %v903 = vsel %vm847, %v832, 0.0
        %v904 = vsel %vm848, %v833, 0.0
        %v905 = vadd.f32 %v849, %v850
        %v906 = vadd.f32 %v905, %v851
        %v907 = vadd.f32 %v906, %v852
        %v908 = vadd.f32 %v907, %v853
        %v909 = vadd.f32 %v908, %v854
        %v910 = vadd.f32 %v909, %v855
        %v911 = vrot.slane %v910, 4
        %v912 = vadd.f32 %v910, %v911
        %v913 = vrot.slane %v912, 2
        %v914 = vadd.f32 %v912, %v913
        %v915 = vrot.slane %v914, 1
        %v916 = vadd.f32 %v914, %v915
        %v917 = vadd.f32 %v856, %v857
        %v918 = vadd.f32 %v917, %v858
        %v919 = vadd.f32 %v918, %v859
        %v920 = vadd.f32 %v919, %v860
        %v921 = vadd.f32 %v920, %v861
        %v922 = vadd.f32 %v921, %v862
        %v923 = vrot.slane %v922, 4
        %v924 = vadd.f32 %v922, %v923
        %v925 = vrot.slane %v924, 2
        %v926 = vadd.f32 %v924, %v925
        %v927 = vrot.slane %v926, 1
        %v928 = vadd.f32 %v926, %v927
        %v929 = vadd.f32 %v863, %v864
        %v930 = vadd.f32 %v929, %v865
        %v931 = vadd.f32 %v930, %v866
        %v932 = vadd.f32 %v931, %v867
        %v933 = vadd.f32 %v932, %v868
        %v934 = vadd.f32 %v933, %v869
        %v935 = vrot.slane %v934, 4
        %v936 = vadd.f32 %v934, %v935
        %v937 = vrot.slane %v936, 2
        %v938 = vadd.f32 %v936, %v937
        %v939 = vrot.slane %v938, 1
        %v940 = vadd.f32 %v938, %v939
        %v941 = vadd.f32 %v870, %v871
        %v942 = vadd.f32 %v941, %v872
        %v943 = vadd.f32 %v942, %v873
        %v944 = vadd.f32 %v943, %v874
        %v945 = vadd.f32 %v944, %v875
        %v946 = vadd.f32 %v945, %v876
        %v947 = vrot.slane %v946, 4
        %v948 = vadd.f32 %v946, %v947
        %v949 = vrot.slane %v948, 2
        %v950 = vadd.f32 %v948, %v949
        %v951 = vrot.slane %v950, 1
        %v952 = vadd.f32 %v950, %v951
        %v953 = vadd.f32 %v877, %v878
        %v954 = vadd.f32 %v953, %v879
        %v955 = vadd.f32 %v954, %v880
        %v956 = vadd.f32 %v955, %v881
        %v957 = vadd.f32 %v956, %v882
        %v958 = vadd.f32 %v957, %v883
        %v959 = vrot.slane %v958, 4
        %v960 = vadd.f32 %v958, %v959
        %v961 = vrot.slane %v960, 2
        %v962 = vadd.f32 %v960, %v961
        %v963 = vrot.slane %v962, 1
        %v964 = vadd.f32 %v962, %v963
        %v965 = vadd.f32 %v884, %v885
        %v966 = vadd.f32 %v965, %v886
        %v967 = vadd.f32 %v966, %v887
        %v968 = vadd.f32 %v967, %v888
        %v969 = vadd.f32 %v968, %v889
        %v970 = vadd.f32 %v969, %v890
        %v971 = vrot.slane %v970, 4
        %v972 = vadd.f32 %v970, %v971
        %v973 = vrot.slane %v972, 2
        %v974 = vadd.f32 %v972, %v973
        %v975 = vrot.slane %v974, 1
        %v976 = vadd.f32 %v974, %v975
        %v977 = vadd.f32 %v891, %v892
        %v978 = vadd.f32 %v977, %v893
        %v979 = vadd.f32 %v978, %v894
        %v980 = vadd.f32 %v979, %v895
        %v981 = vadd.f32 %v980, %v896
        %v982 = vadd.f32 %v981, %v897
        %v983 = vrot.slane %v982, 4
        %v984 = vadd.f32 %v982, %v983
        %v985 = vrot.slane %v984, 2
        %v986 = vadd.f32 %v984, %v985
        %v987 = vrot.slane %v986, 1
        %v988 = vadd.f32 %v986, %v987
        %v989 = vadd.f32 %v898, %v899
        %v990 = vadd.f32 %v989, %v900
        %v991 = vadd.f32 %v990, %v901
        %v992 = vadd.f32 %v991, %v902
        %v993 = vadd.f32 %v992, %v903
        %v994 = vadd.f32 %v993, %v904
        %v995 = vrot.slane %v994, 4
        %v996 = vadd.f32 %v994, %v995
        %v997 = vrot.slane %v996, 2
        %v998 = vadd.f32 %v996, %v997
        %v999 = vrot.slane %v998, 1
        %v1000 = vadd.f32 %v998, %v999
        %v1001 = vmul.f32 %v916, 0.020408163
        %v1002 = vmul.f32 %v928, 0.020408163
        %v1003 = vmul.f32 %v940, 0.020408163
        %v1004 = vmul.f32 %v952, 0.020408163
        %v1005 = vmul.f32 %v964, 0.020408163
        %v1006 = vmul.f32 %v976, 0.020408163
        %v1007 = vmul.f32 %v988, 0.020408163
        %v1008 = vmul.f32 %v1000, 0.020408163
        %v1009 = vpack.c.bf16 %v1001, %v1001
        %v1010 = vpack.c.bf16 %v1002, %v1002
        %v1011 = vpack.c.bf16 %v1003, %v1003
        %v1012 = vpack.c.bf16 %v1004, %v1004
        %v1013 = vpack.c.bf16 %v1005, %v1005
        %v1014 = vpack.c.bf16 %v1006, %v1006
        %v1015 = vpack.c.bf16 %v1007, %v1007
        %v1016 = vpack.c.bf16 %v1008, %v1008
        %v1017 = vld [vmem:[%s3] sm:$0xf]
        %v1018 = vld [vmem:[%s3 + $0x4] sm:$0xf]
        %v1019 = vld [vmem:[%s3 + $0x8] sm:$0xf]
        %v1020 = vld [vmem:[%s3 + $0xc] sm:$0xf]
        %v1021 = vld [vmem:[%s3 + $0x10] sm:$0xf]
        %v1022 = vld [vmem:[%s3 + $0x14] sm:$0xf]
        %v1023 = vld [vmem:[%s3 + $0x18] sm:$0xf]
        %v1024 = vld [vmem:[%s3 + $0x1c] sm:$0xf]
        %v1025 = vld [vmem:[%s3 + $0x20] sm:$0xf]
        %v1026 = vld [vmem:[%s3 + $0x24] sm:$0xf]
        %v1027 = vld [vmem:[%s3 + $0x28] sm:$0xf]
        %v1028 = vld [vmem:[%s3 + $0x2c] sm:$0xf]
        %v1029 = vld [vmem:[%s3 + $0x30] sm:$0xf]
        %v1030 = vld [vmem:[%s3 + $0x34] sm:$0xf]
        %v1031 = vld [vmem:[%s3 + $0x38] sm:$0xf]
        %v1032 = vld [vmem:[%s3 + $0x3c] sm:$0xf]
        %v1033 = vld [vmem:[%s4] sm:$0x1]
        %v1035 = vlaneseq
        %v1036 = vshrl.u32 %v1035, 7
        %v1037 = vsub.s32 0, %v1036
        %v1038 = vrot.slane %v1033, %v1037
        %v1048 = vunpack.c.l.b16 %v1009
        %v1049 = vunpack.c.l.b16 %v1010
        %v1050 = vunpack.c.l.b16 %v1011
        %v1051 = vunpack.c.l.b16 %v1012
        %v1052 = vunpack.c.l.b16 %v1013
        %v1053 = vunpack.c.l.b16 %v1014
        %v1054 = vunpack.c.l.b16 %v1015
        %v1055 = vunpack.c.l.b16 %v1016
        %vm1056 = vcmask 1041409
        %v1057 = vsel %vm1056, %v1049, %v1048
        %vm1058 = vcmask 1042434
        %v1059 = vsel %vm1058, %v1050, %v1057
        %vm1060 = vcmask 1043459
        %v1061 = vsel %vm1060, %v1051, %v1059
        %vm1062 = vcmask 1044484
        %v1063 = vsel %vm1062, %v1052, %v1061
        %vm1064 = vcmask 1045509
        %v1065 = vsel %vm1064, %v1053, %v1063
        %vm1066 = vcmask 1046534
        %v1067 = vsel %vm1066, %v1054, %v1065
        %vm1068 = vcmask 1047559
        %v1069 = vsel %vm1068, %v1055, %v1067
        %v1070 = vpack.c.b16 %v1069, %v1069
        %v1088 = vunpack.c.l.b16 %v1017
        %v1089 = vunpack.c.l.b16 %v1018
        %v1090 = vunpack.c.l.b16 %v1019
        %v1091 = vunpack.c.l.b16 %v1020
        %v1092 = vunpack.c.l.b16 %v1021
        %v1093 = vunpack.c.l.b16 %v1022
        %v1094 = vunpack.c.l.b16 %v1023
        %v1095 = vunpack.c.l.b16 %v1024
        %v1096 = vunpack.c.l.b16 %v1025
        %v1097 = vunpack.c.l.b16 %v1026
        %v1098 = vunpack.c.l.b16 %v1027
        %v1099 = vunpack.c.l.b16 %v1028
        %v1100 = vunpack.c.l.b16 %v1029
        %v1101 = vunpack.c.l.b16 %v1030
        %v1102 = vunpack.c.l.b16 %v1031
        %v1103 = vunpack.c.l.b16 %v1032
        %v1104 = vpack.c.b16 %v1089, %v1088
        %v1105 = vpack.c.b16 %v1091, %v1090
        %v1106 = vpack.c.b16 %v1093, %v1092
        %v1107 = vpack.c.b16 %v1095, %v1094
        %v1108 = vpack.c.b16 %v1097, %v1096
        %v1109 = vpack.c.b16 %v1099, %v1098
        %v1110 = vpack.c.b16 %v1101, %v1100
        %v1111 = vpack.c.b16 %v1103, %v1102
        %1120 = vmatprep.subr.bf16.mxu0 0
        %1121 = vmatpush1.bf16.msra.mxu0 %v1111
        %1122 = vmatprep.subr.bf16.mxu0 0
        %1123 = vmatpush1.bf16.msra.mxu0 %v1110
        %1124 = vmatprep.subr.bf16.mxu0 0
        %1125 = vmatpush1.bf16.msra.mxu0 %v1109
        %1126 = vmatprep.subr.bf16.mxu0 0
        %1127 = vmatpush1.bf16.msra.mxu0 %v1108
        %1128 = vmatprep.subr.bf16.mxu0 0
        %1129 = vmatpush1.bf16.msra.mxu0 %v1107
        %1130 = vmatprep.subr.bf16.mxu0 0
        %1131 = vmatpush1.bf16.msra.mxu0 %v1106
        %1132 = vmatprep.subr.bf16.mxu0 0
        %1133 = vmatpush1.bf16.msra.mxu0 %v1105
        %1134 = vmatprep.subr.bf16.mxu0 0
        %1135 = vmatpush1.bf16.msra.mxu0 %v1104
        %1136 = vmatprep.subr.bf16.mxu0 0
        %1137 = vmatpush2.bf16.msra.mxu0 0
        %1138 = vmatprep.subr.bf16.mxu0 0
        %1139 = vmatpush2.bf16.msra.mxu0 0
        %1140 = vmatprep.subr.bf16.mxu0 0
        %1141 = vmatpush2.bf16.msra.mxu0 0
        %1142 = vmatprep.subr.bf16.mxu0 0
        %1143 = vmatpush2.bf16.msra.mxu0 0
        %1144 = vmatprep.subr.bf16.mxu0 0
        %1145 = vmatpush2.bf16.msra.mxu0 0
        %1146 = vmatprep.subr.bf16.mxu0 0
        %1147 = vmatpush2.bf16.msra.mxu0 0
        %1148 = vmatprep.subr.bf16.mxu0 0
        %1149 = vmatpush2.bf16.msra.mxu0 0
        %1150 = vmatprep.subr.bf16.mxu0 0
        %1151 = vmatpush2.bf16.msra.mxu0 0
        %1152 = vmatprep.mubr.bf16.mxu0 0
        %1153 = vmatmul.mubr.bf16.gmra.mxu0 %v1070
        %v1154 = vpop.f32.mrf.mxu0
        %v1155 = vadd.f32 %v1038, %v1154
        %v1156 = vpop.f32.mrf.mxu0
        %v1157 = vpop.f32.mrf.mxu0
        %v1158 = vpop.f32.mrf.mxu0
        %1159 = vdwg.mxu0
        %1160 = vst [vmem:[%s218] sm:$0xff] %v1155
        %s1161 = sand.u32 %s137, 1
        %s1162 = scalar_lea.sflag [#allocation3], %s1161
        %s1163 = sand.u32 %s137, 1
        %s1164 = smul.addr %s1163, 8
        %s1165 = scalar_lea.vmem [#allocation2], %s1164
        // Predicated region
        $region41: #{finetune_forward.1} parent=39 // pred_check
          %p1166 = pneg %p147
        $region42: #{finetune_forward.1} parent=39 // pred_check_branch
          %1168 = sbr.rel (%p1166) target = $region44
        $region43: #{finetune_forward.1} parent=39 // pred_region
          %s1170 = ssub.s32 128, 128
          %1171 = vsyncadd %s1162, %s1170
          %s1172 = smul.addr %s19, 128
          %s1173 = scalar_lea.hbm %s5, %s1172
          %s1175 = sshll.u32 %s1165, 4
          %s1176 = int_to_ptr.vmem [resolvable:$true] %s1175
          %1178 = dma.vmem_to_hbm [thread:$0]  %s1176, 128, %s1173, %s1162
        $region44: #{finetune_forward.1} parent=39 // pred_fallthru
          _
      $region40: #{finetune_forward.1} parent=5 // pred_fallthru
        _
      %p1179 = scmp.le.s32.totalorder 2, %s14
      // Predicated region
      $region45: #{finetune_forward.1} parent=5 // pred_check
        %p1180 = pneg %p1179
      $region46: #{finetune_forward.1} parent=5 // pred_check_branch
        %1182 = sbr.rel (%p1180) target = $region48
      $region47: #{finetune_forward.1} parent=5 // pred_region
        %s1183 = ssub.s32 %s14, 2
        // Predicated region
        $region49: #{finetune_forward.1} parent=47 // pred_check
          %p1184 = pneg %p153
        $region50: #{finetune_forward.1} parent=47 // pred_check_branch
          %1186 = sbr.rel (%p1184) target = $region52
        $region51: #{finetune_forward.1} parent=47 // pred_region
          %s1187 = sand.u32 %s138, 1
          %s1188 = scalar_lea.sflag [#allocation3], %s1187
          %s1189 = sand.u32 %s138, 1
          %s1190 = smul.addr %s1189, 8
          %s1191 = scalar_lea.vmem [#allocation2], %s1190
          %1192 = dma.done %s1188, 128
        $region52: #{finetune_forward.1} parent=47 // pred_fallthru
          _
      $region48: #{finetune_forward.1} parent=5 // pred_fallthru
        _
    $region6: #{finetune_forward.1} parent=1 // loop_footer
      %s18 = sadd.s32 1, %s14
    $region7: #{finetune_forward.1} parent=1 // loop_footer_branch
      %13 = sbr.rel target = $region3
    $region8: #{finetune_forward.1} parent=1 // loop_exit
      _
    %1193 = vsyncpa [#allocation3], 1
    %s1194 = scalar_lea.sflag [#allocation3], 1
    %1195 = vsyncpa %s1194, 1

</llo_original>
